<compile_context>
chip_gen: v6e
topology: v6e:2x2x1
jax: 0.10.0
libtpu: 0.0.40
codegen_flags: <defaults>
</compile_context>

<pallas_src>
import functools

import jax
import jax.numpy as jnp
from jax import lax
from jax.experimental import pallas as pl
from jax.experimental.pallas import tpu as pltpu


def _scale_conv1x1_kernel(w_ref, s_ref, x_ref, o_ref, acc_ref, *,
                          k_steps, ck, cin, compute_dtype):
    # w_ref: (Cout, ck)  weight chunk along Cin
    # s_ref: (1, ck)     per-batch per-channel scale chunk
    # x_ref: (ck, HW)    activation chunk for this batch element
    # o_ref: (Cout, HW)  output for this batch element
    # acc_ref: (Cout, HW) f32 accumulator (VMEM scratch)
    k = pl.program_id(1)

    @pl.when(k == 0)
    def _init():
        acc_ref[...] = jnp.zeros_like(acc_ref)

    # Fold the scale into the (small) weight chunk in f32, then cast for MXU.
    ws = w_ref[...].astype(jnp.float32) * s_ref[...].astype(jnp.float32)
    x = x_ref[...]

    rem = cin - (k_steps - 1) * ck
    if rem != ck:
        # Trailing K chunk is partial: the padded region of the input blocks
        # is unspecified, so zero it on BOTH operands before it hits the MXU.
        valid = jnp.where(k == k_steps - 1, rem, ck)
        col = lax.broadcasted_iota(jnp.int32, ws.shape, 1)
        ws = jnp.where(col < valid, ws, 0.0)
        row = lax.broadcasted_iota(jnp.int32, x.shape, 0)
        x = jnp.where(row < valid, x, jnp.zeros_like(x))

    acc_ref[...] += jnp.dot(
        ws.astype(compute_dtype),
        x.astype(compute_dtype),
        preferred_element_type=jnp.float32,
    )

    @pl.when(k == k_steps - 1)
    def _finalize():
        o_ref[...] = acc_ref[...].astype(o_ref.dtype)


def mul_conv2d_1x1(x_nchw, scale_nc11, weight_oi11, *,
                   compute_dtype=jnp.bfloat16, k_chunk=128):
    """Computes conv2d_1x1(x * scale), no bias, matching the PyTorch module."""
    n, cin, h, w = x_nchw.shape
    cout = weight_oi11.shape[0]
    hw = h * w

    # Free (no-transpose) layout changes.
    x_flat = x_nchw.reshape(n, cin, hw)          # (N, Cin, HW)
    s_flat = scale_nc11.reshape(n, 1, cin)       # (N, 1, Cin)
    w_mat = weight_oi11.reshape(cout, cin)       # (Cout, Cin)

    # K-split only helps when there is no batch-level pipelining (N == 1).
    # For N > 1 use a single full-Cin step so the weight stays VMEM-resident
    # (constant index_map -> no re-DMA across batch grid steps).
    ck = k_chunk if (n == 1 and cin > k_chunk) else cin
    k_steps = pl.cdiv(cin, ck)

    out_itemsize = jnp.dtype(x_nchw.dtype).itemsize
    cost = pl.CostEstimate(
        flops=2 * n * hw * cin * cout,
        transcendentals=0,
        bytes_accessed=(
            x_flat.size * x_flat.dtype.itemsize
            + s_flat.size * s_flat.dtype.itemsize
            + w_mat.size * w_mat.dtype.itemsize      # weight read once
            + n * cout * hw * out_itemsize
        ),
    )

    kernel = functools.partial(
        _scale_conv1x1_kernel,
        k_steps=k_steps, ck=ck, cin=cin, compute_dtype=compute_dtype,
    )

    out_flat = pl.pallas_call(
        kernel,
        out_shape=jax.ShapeDtypeStruct((n, cout, hw), x_nchw.dtype),
        grid=(n, k_steps),
        in_specs=[
            pl.BlockSpec((cout, ck), lambda i, k: (0, k)),         # weight chunk
            pl.BlockSpec((None, 1, ck), lambda i, k: (i, 0, k)),   # scale chunk
            pl.BlockSpec((None, ck, hw), lambda i, k: (i, k, 0)),  # activation chunk
        ],
        out_specs=pl.BlockSpec((None, cout, hw), lambda i, k: (i, 0, 0)),
        scratch_shapes=[pltpu.VMEM((cout, hw), jnp.float32)],
        compiler_params=pltpu.CompilerParams(
            dimension_semantics=("parallel", "arbitrary"),
        ),
        cost_estimate=cost,
    )(w_mat, s_flat, x_flat)

    # Free reshape back to NCHW — no transpose needed in this formulation.
    return out_flat.reshape(n, cout, h, w)


if __name__ == "__main__":
    key = jax.random.PRNGKey(0)
    k1, k2, k3, k4, k5, k6 = jax.random.split(key, 6)

    # ---- Benchmark shape from the original module (N=1) ------------------
    N, CIN, H, W, COUT = 1, 960, 14, 14, 160
    x300 = jax.random.normal(k1, (N, CIN, H, W), dtype=jnp.float32)
    x305 = jax.random.normal(k2, (N, CIN, 1, 1), dtype=jnp.float32)
    conv_w = jax.random.normal(k3, (COUT, CIN, 1, 1), dtype=jnp.float32) * 0.02

    out = mul_conv2d_1x1(x300, x305, conv_w)     # bf16 MXU, f32 accumulate
    jax.block_until_ready(out)
    assert out.shape == (N, COUT, H, W), out.shape

    # Matched mixed-precision reference (same scale-fold + bf16 MXU inputs).
    w_mat = conv_w.reshape(COUT, CIN)
    ws_ref = (w_mat[None, :, :] * x305.reshape(N, 1, CIN)).astype(jnp.bfloat16)
    x_ref_b = x300.reshape(N, CIN, H * W).astype(jnp.bfloat16)
    ref_mixed = jnp.einsum(
        "nok,nkl->nol", ws_ref, x_ref_b, preferred_element_type=jnp.float32
    ).reshape(N, COUT, H, W)
    assert jnp.allclose(out.astype(jnp.float32), ref_mixed, atol=1e-2, rtol=1e-2)

    # Loose check against the pure-f32 reference (bf16 rounding of inputs only).
    ref_f32 = jnp.einsum("nchw,oc->nohw", x300 * x305, w_mat)
    assert jnp.allclose(out.astype(jnp.float32), ref_f32, atol=5e-2, rtol=5e-2)

    # ---- Small multi-batch sanity check (resident-weight path, f32 MXU) ---
    n2, c2, h2, w2, o2 = 2, 64, 8, 8, 32
    xs = jax.random.normal(k4, (n2, c2, h2, w2), dtype=jnp.float32)
    ss = jax.random.normal(k5, (n2, c2, 1, 1), dtype=jnp.float32)
    wsm = jax.random.normal(k6, (o2, c2, 1, 1), dtype=jnp.float32) * 0.05
    out2 = mul_conv2d_1x1(xs, ss, wsm, compute_dtype=jnp.float32)
    jax.block_until_ready(out2)
    ref2 = jnp.einsum("nchw,oc->nohw", xs * ss, wsm.reshape(o2, c2))
    assert jnp.allclose(out2, ref2, atol=1e-4, rtol=1e-4)

    print("KERNEL_OK")
</pallas_src>

<mosaic_0001>
module attributes {stable_mosaic.version = 11 : i64} {
  func.func @_scale_conv1x1_kernel(%arg0: i32, %arg1: i32, %arg2: memref<160x128xf32, #tpu.memory_space<vmem>>, %arg3: memref<1x1x128xf32, #tpu.memory_space<vmem>>, %arg4: memref<1x128x196xf32, #tpu.memory_space<vmem>>, %arg5: memref<1x160x196xf32, #tpu.memory_space<vmem>>, %arg6: memref<160x196xf32, #tpu.memory_space<vmem>>) attributes {dimension_semantics = [#tpu.dimension_semantics<parallel>, #tpu.dimension_semantics<arbitrary>], iteration_bounds = array<i64: 1, 8>, scalar_prefetch = 0 : i64, scratch_operands = 1 : i64, tpu.core_type = #tpu.core_type<tc>, window_params = [{transform_indices = @transform_0, window_bounds = array<i64: 160, 128>}, {transform_indices = @transform_1, window_bounds = array<i64: 1, 1, 128>}, {transform_indices = @transform_2, window_bounds = array<i64: 1, 128, 196>}, {transform_indices = @transform_3, window_bounds = array<i64: 1, 160, 196>}]} {
    %c0_i32 = arith.constant 0 : i32
    %0 = arith.cmpi eq, %arg1, %c0_i32 : i32
    %1 = arith.extui %0 : i1 to i32
    %c0_i32_0 = arith.constant 0 : i32
    %2 = arith.cmpi ne, %1, %c0_i32_0 : i32
    scf.if %2 {
      %cst_16 = arith.constant 0.000000e+00 : f32
      %31 = vector.broadcast %cst_16 : f32 to vector<160x196xf32>
      %c0_17 = arith.constant 0 : index
      %c0_18 = arith.constant 0 : index
      %32 = vector.load %arg6[%c0_17, %c0_18] : memref<160x196xf32, #tpu.memory_space<vmem>>, vector<160x196xf32>
      tpu.vector_store %arg6[%c0_17, %c0_18], %31 {strides = array<i32>} : memref<160x196xf32, #tpu.memory_space<vmem>>, vector<160x196xf32>,
    } else {
    }
    %c0 = arith.constant 0 : index
    %c0_1 = arith.constant 0 : index
    %3 = vector.load %arg2[%c0, %c0_1] : memref<160x128xf32, #tpu.memory_space<vmem>>, vector<160x128xf32>
    %c0_2 = arith.constant 0 : index
    %c0_3 = arith.constant 0 : index
    %c0_4 = arith.constant 0 : index
    %4 = vector.load %arg3[%c0_2, %c0_3, %c0_4] : memref<1x1x128xf32, #tpu.memory_space<vmem>>, vector<1x1x128xf32>
    %5 = vector.shape_cast %4 : vector<1x1x128xf32> to vector<1x128xf32>
    %6 = vector.broadcast %5 : vector<1x128xf32> to vector<160x128xf32>
    %7 = arith.mulf %3, %6 : vector<160x128xf32>
    %c0_5 = arith.constant 0 : index
    %c0_6 = arith.constant 0 : index
    %c0_7 = arith.constant 0 : index
    %8 = vector.load %arg4[%c0_5, %c0_6, %c0_7] : memref<1x128x196xf32, #tpu.memory_space<vmem>>, vector<1x128x196xf32>
    %9 = vector.shape_cast %8 : vector<1x128x196xf32> to vector<128x196xf32>
    %c7_i32 = arith.constant 7 : i32
    %10 = arith.cmpi eq, %arg1, %c7_i32 : i32
    %c64_i32 = arith.constant 64 : i32
    %c128_i32 = arith.constant 128 : i32
    %11 = arith.select %10, %c64_i32, %c128_i32 : i32
    %12 = tpu.iota {dimensions = array<i32: 1>} : vector<160x128xi32>
    %13 = vector.broadcast %11 : i32 to vector<160x128xi32>
    %14 = arith.cmpi slt, %12, %13 : vector<160x128xi32>
    %cst = arith.constant 0.000000e+00 : f32
    %15 = vector.broadcast %cst : f32 to vector<160x128xf32>
    %16 = arith.select %14, %7, %15 : vector<160x128xi1>, vector<160x128xf32>
    %17 = tpu.iota {dimensions = array<i32: 0>} : vector<128x196xi32>
    %18 = vector.broadcast %11 : i32 to vector<128x196xi32>
    %19 = arith.cmpi slt, %17, %18 : vector<128x196xi32>
    %cst_8 = arith.constant 0.000000e+00 : f32
    %20 = vector.broadcast %cst_8 : f32 to vector<128x196xf32>
    %21 = arith.select %19, %9, %20 : vector<128x196xi1>, vector<128x196xf32>
    %c0_9 = arith.constant 0 : index
    %c0_10 = arith.constant 0 : index
    %22 = vector.load %arg6[%c0_9, %c0_10] : memref<160x196xf32, #tpu.memory_space<vmem>>, vector<160x196xf32>
    %23 = arith.truncf %16 : vector<160x128xf32> to vector<160x128xbf16>
    %24 = arith.truncf %21 : vector<128x196xf32> to vector<128x196xbf16>
    %cst_11 = arith.constant dense<0.000000e+00> : vector<160x196xf32>
    %25 = tpu.matmul %23, %24, %cst_11 {dimension_numbers = #tpu.dot_dimension_numbers<[1], [0], [0], [1], [0, 0, 1, 1], [], []>} : vector<160x128xbf16>, vector<128x196xbf16>, vector<160x196xf32> -> vector<160x196xf32>
    %26 = arith.addf %22, %25 : vector<160x196xf32>
    %c0_12 = arith.constant 0 : index
    %c0_13 = arith.constant 0 : index
    %27 = vector.load %arg6[%c0_12, %c0_13] : memref<160x196xf32, #tpu.memory_space<vmem>>, vector<160x196xf32>
    tpu.vector_store %arg6[%c0_12, %c0_13], %26 {strides = array<i32>} : memref<160x196xf32, #tpu.memory_space<vmem>>, vector<160x196xf32>,
    %c7_i32_14 = arith.constant 7 : i32
    %28 = arith.cmpi eq, %arg1, %c7_i32_14 : i32
    %29 = arith.extui %28 : i1 to i32
    %c0_i32_15 = arith.constant 0 : i32
    %30 = arith.cmpi ne, %29, %c0_i32_15 : i32
    scf.if %30 {
      %c0_16 = arith.constant 0 : index
      %c0_17 = arith.constant 0 : index
      %31 = vector.load %arg6[%c0_16, %c0_17] : memref<160x196xf32, #tpu.memory_space<vmem>>, vector<160x196xf32>
      %c0_18 = arith.constant 0 : index
      %c0_19 = arith.constant 0 : index
      %c0_20 = arith.constant 0 : index
      %32 = vector.load %arg5[%c0_18, %c0_19, %c0_20] : memref<1x160x196xf32, #tpu.memory_space<vmem>>, vector<1x160x196xf32>
      %33 = vector.shape_cast %32 : vector<1x160x196xf32> to vector<160x196xf32>
      %34 = vector.shape_cast %31 : vector<160x196xf32> to vector<1x160x196xf32>
      tpu.vector_store %arg5[%c0_18, %c0_19, %c0_20], %34 {strides = array<i32>} : memref<1x160x196xf32, #tpu.memory_space<vmem>>, vector<1x160x196xf32>,
    } else {
    }
    return
  }
  func.func @transform_0(%arg0: i32, %arg1: i32) -> (i32, i32) {
    %c0_i32 = arith.constant 0 : i32
    %c0_i32_0 = arith.constant 0 : i32
    return %c0_i32, %arg1 : i32, i32
  }
  func.func @transform_1(%arg0: i32, %arg1: i32) -> (i32, i32, i32) {
    %c0_i32 = arith.constant 0 : i32
    %c0_i32_0 = arith.constant 0 : i32
    return %arg0, %c0_i32, %arg1 : i32, i32, i32
  }
  func.func @transform_2(%arg0: i32, %arg1: i32) -> (i32, i32, i32) {
    %c0_i32 = arith.constant 0 : i32
    %c0_i32_0 = arith.constant 0 : i32
    return %arg0, %arg1, %c0_i32 : i32, i32, i32
  }
  func.func @transform_3(%arg0: i32, %arg1: i32) -> (i32, i32, i32) {
    %c0_i32 = arith.constant 0 : i32
    %c0_i32_0 = arith.constant 0 : i32
    %c0_i32_1 = arith.constant 0 : i32
    return %arg0, %c0_i32, %c0_i32_0 : i32, i32, i32
  }
}

</mosaic_0001>

<llo_original>
// kernel: tpu_custom_call.1
$region0: #{tpu_custom_call.1}
  #allocation0 [shape = 'u32[]', space=smem, size = 0x4, offset = 0x4, fixed_abs, tag = 'smem constant byte address 0x4 - core index']
  #allocation1 [shape = 'u32[144,128]{1,0:T(1,128)}', space=vmem, size = 0x12000, scoped, tag = 'internal scratch']
  #allocation2 [shape = 'f32[160,196]{1,0:T(8,128)}', space=vmem, size = 0x28000, scoped, tag = 'scratch operand']
  %s0 = inlined_call_operand.vmem [shape: f32[160,960], index: 0, kind: input, shape index: {}]
  %s1 = inlined_call_operand.vmem [shape: f32[1,1,960], index: 1, kind: input, shape index: {}]
  %s2 = inlined_call_operand.vmem [shape: f32[1,960,196], index: 2, kind: input, shape index: {}]
  %s3 = inlined_call_operand.hbm [shape: f32[1,160,196], index: 3, kind: output, shape index: {}]
  %s4 = sld [smem:[#allocation0]]
  $region91: #{tpu_custom_call.1} parent=0
    _
  %s6 = ssub.s32 1, %s4
  %s7 = scalar_select 0, %s6, %s4
  $region1: #{tpu_custom_call.1} parent=0
    #allocation3 [shape = 'u8[163840]{0}', space=vmem, size = 0x28000, scoped, tag = 'input window, operand 0']
    #allocation4 [shape = 'u8[163840]{0}', space=vmem, size = 0x28000, scoped, tag = 'output window, operand 0, single buffered']
    #allocation5 [shape = 's32[2]{0}', space=sflag, size = 0x8, scoped, tag = 'scoped memory for tpu_custom_call.1']
    %8 = vsyncpa [#allocation5], 0
    loop: start=0, step=1, limit=10
    $region2: #{tpu_custom_call.1} parent=1 // loop_pre_header
      _
    $region3: #{tpu_custom_call.1} parent=1 // loop_header
      %s10 = sphi 0, %s14
      %p11 = scmp.ge.s32.totalorder %s10, 10
      %s17 = sphi 0, %s29
      %s18 = sphi 0, %s25
      %s19 = sphi 0, %s17
      %s20 = sphi 0, %s18
      %s21 = sphi 0, %s19
      %s22 = sphi 0, %s20
      %s32 = sphi 0, %s34
      %s35 = sphi 0, %s32
      %s36 = sphi 0, %s35
      %s52 = sphi 0, %s36
      %s60 = sphi 0, %s62
      %s63 = sphi 0, %s60
      %s64 = sphi 0, %s63
      %s80 = sphi 0, %s64
      %s88 = sphi 0, %s90
      %s91 = sphi 0, %s88
      %s92 = sphi 0, %s91
      %s108 = sphi 0, %s92
      %s114 = sphi 0, %s116
      %s117 = sphi 0, %s114
      %s118 = sphi 0, %s117
      %s134 = sphi 0, %s118
    $region4: #{tpu_custom_call.1} parent=1 // loop_header_branch
      %13 = sbr.rel (%p11) target = $region8
    $region5: #{tpu_custom_call.1} parent=1 // loop_body
      %s15 = ssub.s32 %s10, 1
      %s16 = ssub.s32 %s10, 2
      %s23 = sadd.s32 1, %s18
      %p24 = scmp.ge.s32.totalorder %s23, 8
      %s25 = scalar_select %p24, 0, %s23
      %s26 = sadd.s32 1, %s17
      %s27 = scalar_select %p24, %s26, %s17
      %p28 = scmp.ge.s32.totalorder %s27, 1
      %s29 = scalar_select %p28, 0, %s27
      %s30 = ssub.s32 %s18, %s25
      %p31 = scmp.eq.s32.totalorder %s30, 0
      %s33 = sadd.s32 %s32, 1
      %s34 = scalar_select %p31, %s32, %s33
      %p37 = pneg %p31
      %p38 = scmp.eq.s32.totalorder %s10, 7
      %p39 = por %p37, %p38
      %p40 = scmp.ne.s32.totalorder %s32, %s35
      %p41 = scmp.eq.s32.totalorder %s10, 0
      %p42 = por %p40, %p41
      %p43 = scmp.ne.s32.totalorder %s32, %s35
      %p44 = scmp.eq.s32.totalorder %s15, 7
      %p45 = por %p43, %p44
      %p46 = scmp.ne.s32.totalorder %s35, %s36
      %p47 = scmp.eq.s32.totalorder %s15, 0
      %p48 = por %p46, %p47
      %p49 = scmp.ne.s32.totalorder %s35, %s36
      %p50 = scmp.eq.s32.totalorder %s16, 7
      %p51 = por %p49, %p50
      %p53 = scmp.ne.s32.totalorder %s36, %s52
      %p54 = scmp.eq.s32.totalorder %s16, 0
      %p55 = por %p53, %p54
      %s56 = ssub.s32 %s17, %s29
      %s57 = ssub.s32 %s18, %s25
      %s58 = sor.u32 %s56, %s57
      %p59 = scmp.eq.s32.totalorder %s58, 0
      %s61 = sadd.s32 %s60, 1
      %s62 = scalar_select %p59, %s60, %s61
      %p65 = pneg %p59
      %p66 = scmp.eq.s32.totalorder %s10, 7
      %p67 = por %p65, %p66
      %p68 = scmp.ne.s32.totalorder %s60, %s63
      %p69 = scmp.eq.s32.totalorder %s10, 0
      %p70 = por %p68, %p69
      %p71 = scmp.ne.s32.totalorder %s60, %s63
      %p72 = scmp.eq.s32.totalorder %s15, 7
      %p73 = por %p71, %p72
      %p74 = scmp.ne.s32.totalorder %s63, %s64
      %p75 = scmp.eq.s32.totalorder %s15, 0
      %p76 = por %p74, %p75
      %p77 = scmp.ne.s32.totalorder %s63, %s64
      %p78 = scmp.eq.s32.totalorder %s16, 7
      %p79 = por %p77, %p78
      %p81 = scmp.ne.s32.totalorder %s64, %s80
      %p82 = scmp.eq.s32.totalorder %s16, 0
      %p83 = por %p81, %p82
      %s84 = ssub.s32 %s17, %s29
      %s85 = ssub.s32 %s18, %s25
      %s86 = sor.u32 %s84, %s85
      %p87 = scmp.eq.s32.totalorder %s86, 0
      %s89 = sadd.s32 %s88, 1
      %s90 = scalar_select %p87, %s88, %s89
      %p93 = pneg %p87
      %p94 = scmp.eq.s32.totalorder %s10, 7
      %p95 = por %p93, %p94
      %p96 = scmp.ne.s32.totalorder %s88, %s91
      %p97 = scmp.eq.s32.totalorder %s10, 0
      %p98 = por %p96, %p97
      %p99 = scmp.ne.s32.totalorder %s88, %s91
      %p100 = scmp.eq.s32.totalorder %s15, 7
      %p101 = por %p99, %p100
      %p102 = scmp.ne.s32.totalorder %s91, %s92
      %p103 = scmp.eq.s32.totalorder %s15, 0
      %p104 = por %p102, %p103
      %p105 = scmp.ne.s32.totalorder %s91, %s92
      %p106 = scmp.eq.s32.totalorder %s16, 7
      %p107 = por %p105, %p106
      %p109 = scmp.ne.s32.totalorder %s92, %s108
      %p110 = scmp.eq.s32.totalorder %s16, 0
      %p111 = por %p109, %p110
      %s112 = ssub.s32 %s17, %s29
      %p113 = scmp.eq.s32.totalorder %s112, 0
      %s115 = sadd.s32 %s114, 1
      %s116 = scalar_select %p113, %s114, %s115
      %p119 = pneg %p113
      %p120 = scmp.eq.s32.totalorder %s10, 7
      %p121 = por %p119, %p120
      %p122 = scmp.ne.s32.totalorder %s114, %s117
      %p123 = scmp.eq.s32.totalorder %s10, 0
      %p124 = por %p122, %p123
      %p125 = scmp.ne.s32.totalorder %s114, %s117
      %p126 = scmp.eq.s32.totalorder %s15, 7
      %p127 = por %p125, %p126
      %p128 = scmp.ne.s32.totalorder %s117, %s118
      %p129 = scmp.eq.s32.totalorder %s15, 0
      %p130 = por %p128, %p129
      %p131 = scmp.ne.s32.totalorder %s117, %s118
      %p132 = scmp.eq.s32.totalorder %s16, 7
      %p133 = por %p131, %p132
      %p135 = scmp.ne.s32.totalorder %s118, %s134
      %p136 = scmp.eq.s32.totalorder %s16, 0
      %p137 = por %p135, %p136
      %p138 = scmp.le.s32.totalorder 1, %s10
      %p139 = scmp.lt.s32.totalorder %s10, 9
      %p140 = pnand %p138, %p139
      %p141 = pneg %p140
      // Predicated region
      $region9: #{tpu_custom_call.1} parent=5 // pred_check
        _
      $region10: #{tpu_custom_call.1} parent=5 // pred_check_branch
        %143 = sbr.rel (%p140) target = $region12
      $region11: #{tpu_custom_call.1} parent=5 // pred_region
        %s144 = ssub.s32 %s10, 1
      $region12: #{tpu_custom_call.1} parent=5 // pred_fallthru
        _
      %p145 = scmp.lt.s32.totalorder %s10, 8
      // Predicated region
      $region13: #{tpu_custom_call.1} parent=5 // pred_check
        %p146 = pneg %p145
      $region14: #{tpu_custom_call.1} parent=5 // pred_check_branch
        %148 = sbr.rel (%p146) target = $region16
      $region15: #{tpu_custom_call.1} parent=5 // pred_region
        // Predicated region
        $region17: #{tpu_custom_call.1} parent=15 // pred_check
          %p149 = pneg %p42
        $region18: #{tpu_custom_call.1} parent=15 // pred_check_branch
          %151 = sbr.rel (%p149) target = $region20
        $region19: #{tpu_custom_call.1} parent=15 // pred_region
          %s152 = sand.u32 %s32, 1
          %s153 = sand.u32 %s32, 1
          %s154 = smul.addr %s153, 160
          %s155 = scalar_lea.vmem [#allocation3], %s154
          %s156 = smul.addr %s18, 8
          %s157 = scalar_lea.vmem %s0, %s156
          // Predicated region
          $region21: #{tpu_custom_call.1} parent=19 // pred_check
            _
          $region22: #{tpu_custom_call.1} parent=19 // pred_check_branch
            %159 = sbr.rel (0) target = $region24
          $region23: #{tpu_custom_call.1} parent=19 // pred_region
            // Predicated region
            $region25: #{tpu_custom_call.1} parent=23 // pred_check
              _
            $region26: #{tpu_custom_call.1} parent=23 // pred_check_branch
              %161 = sbr.rel (0) target = $region28
            $region27: #{tpu_custom_call.1} parent=23 // pred_region
              // Predicated region
              $region40: #{tpu_custom_call.1} parent=27 // pred_check
                _
              $region41: #{tpu_custom_call.1} parent=27 // pred_check_branch
                %215 = sbr.rel (0) target = $region43
              $region42: #{tpu_custom_call.1} parent=27 // pred_region
                loop: start=0, step=1, limit=1
                $region44: #{tpu_custom_call.1} parent=42 // loop_pre_header
                  _
                $region45: #{tpu_custom_call.1} parent=42 // loop_header
                  %s217 = sphi 0, %s221
                  %p218 = scmp.ge.s32.totalorder %s217, 1
                  %s222 = sphi %s157, %s157
                  %s223 = sphi %s155, %s155
                $region46: #{tpu_custom_call.1} parent=42 // loop_header_branch
                  %220 = sbr.rel (%p218) target = $region50
                $region47: #{tpu_custom_call.1} parent=42 // loop_body
                  %v224 = vld [vmem:[%s222] sm:$0xff]
                  %225 = vst [vmem:[%s223] sm:$0xff] %v224
                  %v226 = vld [vmem:[%s222 + $0x40] sm:$0xff]
                  %227 = vst [vmem:[%s223 + $0x8] sm:$0xff] %v226
                  %v228 = vld [vmem:[%s222 + $0x80] sm:$0xff]
                  %229 = vst [vmem:[%s223 + $0x10] sm:$0xff] %v228
                  %v230 = vld [vmem:[%s222 + $0xc0] sm:$0xff]
                  %231 = vst [vmem:[%s223 + $0x18] sm:$0xff] %v230
                  %v232 = vld [vmem:[%s222 + $0x100] sm:$0xff]
                  %233 = vst [vmem:[%s223 + $0x20] sm:$0xff] %v232
                  %v234 = vld [vmem:[%s222 + $0x140] sm:$0xff]
                  %235 = vst [vmem:[%s223 + $0x28] sm:$0xff] %v234
                  %v236 = vld [vmem:[%s222 + $0x180] sm:$0xff]
                  %237 = vst [vmem:[%s223 + $0x30] sm:$0xff] %v236
                  %v238 = vld [vmem:[%s222 + $0x1c0] sm:$0xff]
                  %239 = vst [vmem:[%s223 + $0x38] sm:$0xff] %v238
                  %v240 = vld [vmem:[%s222 + $0x200] sm:$0xff]
                  %241 = vst [vmem:[%s223 + $0x40] sm:$0xff] %v240
                  %v242 = vld [vmem:[%s222 + $0x240] sm:$0xff]
                  %243 = vst [vmem:[%s223 + $0x48] sm:$0xff] %v242
                  %v244 = vld [vmem:[%s222 + $0x280] sm:$0xff]
                  %245 = vst [vmem:[%s223 + $0x50] sm:$0xff] %v244
                  %v246 = vld [vmem:[%s222 + $0x2c0] sm:$0xff]
                  %247 = vst [vmem:[%s223 + $0x58] sm:$0xff] %v246
                  %v248 = vld [vmem:[%s222 + $0x300] sm:$0xff]
                  %249 = vst [vmem:[%s223 + $0x60] sm:$0xff] %v248
                  %v250 = vld [vmem:[%s222 + $0x340] sm:$0xff]
                  %251 = vst [vmem:[%s223 + $0x68] sm:$0xff] %v250
                  %v252 = vld [vmem:[%s222 + $0x380] sm:$0xff]
                  %253 = vst [vmem:[%s223 + $0x70] sm:$0xff] %v252
                  %v254 = vld [vmem:[%s222 + $0x3c0] sm:$0xff]
                  %255 = vst [vmem:[%s223 + $0x78] sm:$0xff] %v254
                  %v256 = vld [vmem:[%s222 + $0x400] sm:$0xff]
                  %257 = vst [vmem:[%s223 + $0x80] sm:$0xff] %v256
                  %v258 = vld [vmem:[%s222 + $0x440] sm:$0xff]
                  %259 = vst [vmem:[%s223 + $0x88] sm:$0xff] %v258
                  %v260 = vld [vmem:[%s222 + $0x480] sm:$0xff]
                  %261 = vst [vmem:[%s223 + $0x90] sm:$0xff] %v260
                  %v262 = vld [vmem:[%s222 + $0x4c0] sm:$0xff]
                  %263 = vst [vmem:[%s223 + $0x98] sm:$0xff] %v262
                $region48: #{tpu_custom_call.1} parent=42 // loop_footer
                  %s221 = sadd.s32 1, %s217
                $region49: #{tpu_custom_call.1} parent=42 // loop_footer_branch
                  %216 = sbr.rel target = $region45
                $region50: #{tpu_custom_call.1} parent=42 // loop_exit
                  _
              $region43: #{tpu_custom_call.1} parent=27 // pred_fallthru
                _
              // Predicated region
              $region51: #{tpu_custom_call.1} parent=27 // pred_check
                _
              $region52: #{tpu_custom_call.1} parent=27 // pred_check_branch
                %265 = sbr.rel target = $region54
              $region53: #{tpu_custom_call.1} parent=27 // pred_region
                _
              $region54: #{tpu_custom_call.1} parent=27 // pred_fallthru
                _
            $region28: #{tpu_custom_call.1} parent=23 // pred_fallthru
              _
            // Predicated region
            $region29: #{tpu_custom_call.1} parent=23 // pred_check
              _
            $region30: #{tpu_custom_call.1} parent=23 // pred_check_branch
              %163 = sbr.rel target = $region32
            $region31: #{tpu_custom_call.1} parent=23 // pred_region
              %s165 = ssub.s32 256, 1
              loop: start=0, step=1, limit=1
              $region33: #{tpu_custom_call.1} parent=31 // loop_pre_header
                _
              $region34: #{tpu_custom_call.1} parent=31 // loop_header
                %s167 = sphi 0, %s171
                %p168 = scmp.ge.s32.totalorder %s167, 1
                %s172 = sphi %s157, %s157
                %s173 = sphi %s155, %s155
              $region35: #{tpu_custom_call.1} parent=31 // loop_header_branch
                %170 = sbr.rel (%p168) target = $region39
              $region36: #{tpu_custom_call.1} parent=31 // loop_body
                %v174 = vld [vmem:[%s172] sm:%s165]
                %175 = vst [vmem:[%s173] sm:%s165] %v174
                %v176 = vld [vmem:[%s172 + $0x40] sm:%s165]
                %177 = vst [vmem:[%s173 + $0x8] sm:%s165] %v176
                %v178 = vld [vmem:[%s172 + $0x80] sm:%s165]
                %179 = vst [vmem:[%s173 + $0x10] sm:%s165] %v178
                %v180 = vld [vmem:[%s172 + $0xc0] sm:%s165]
                %181 = vst [vmem:[%s173 + $0x18] sm:%s165] %v180
                %v182 = vld [vmem:[%s172 + $0x100] sm:%s165]
                %183 = vst [vmem:[%s173 + $0x20] sm:%s165] %v182
                %v184 = vld [vmem:[%s172 + $0x140] sm:%s165]
                %185 = vst [vmem:[%s173 + $0x28] sm:%s165] %v184
                %v186 = vld [vmem:[%s172 + $0x180] sm:%s165]
                %187 = vst [vmem:[%s173 + $0x30] sm:%s165] %v186
                %v188 = vld [vmem:[%s172 + $0x1c0] sm:%s165]
                %189 = vst [vmem:[%s173 + $0x38] sm:%s165] %v188
                %v190 = vld [vmem:[%s172 + $0x200] sm:%s165]
                %191 = vst [vmem:[%s173 + $0x40] sm:%s165] %v190
                %v192 = vld [vmem:[%s172 + $0x240] sm:%s165]
                %193 = vst [vmem:[%s173 + $0x48] sm:%s165] %v192
                %v194 = vld [vmem:[%s172 + $0x280] sm:%s165]
                %195 = vst [vmem:[%s173 + $0x50] sm:%s165] %v194
                %v196 = vld [vmem:[%s172 + $0x2c0] sm:%s165]
                %197 = vst [vmem:[%s173 + $0x58] sm:%s165] %v196
                %v198 = vld [vmem:[%s172 + $0x300] sm:%s165]
                %199 = vst [vmem:[%s173 + $0x60] sm:%s165] %v198
                %v200 = vld [vmem:[%s172 + $0x340] sm:%s165]
                %201 = vst [vmem:[%s173 + $0x68] sm:%s165] %v200
                %v202 = vld [vmem:[%s172 + $0x380] sm:%s165]
                %203 = vst [vmem:[%s173 + $0x70] sm:%s165] %v202
                %v204 = vld [vmem:[%s172 + $0x3c0] sm:%s165]
                %205 = vst [vmem:[%s173 + $0x78] sm:%s165] %v204
                %v206 = vld [vmem:[%s172 + $0x400] sm:%s165]
                %207 = vst [vmem:[%s173 + $0x80] sm:%s165] %v206
                %v208 = vld [vmem:[%s172 + $0x440] sm:%s165]
                %209 = vst [vmem:[%s173 + $0x88] sm:%s165] %v208
                %v210 = vld [vmem:[%s172 + $0x480] sm:%s165]
                %211 = vst [vmem:[%s173 + $0x90] sm:%s165] %v210
                %v212 = vld [vmem:[%s172 + $0x4c0] sm:%s165]
                %213 = vst [vmem:[%s173 + $0x98] sm:%s165] %v212
              $region37: #{tpu_custom_call.1} parent=31 // loop_footer
                %s171 = sadd.s32 1, %s167
              $region38: #{tpu_custom_call.1} parent=31 // loop_footer_branch
                %166 = sbr.rel target = $region34
              $region39: #{tpu_custom_call.1} parent=31 // loop_exit
                _
            $region32: #{tpu_custom_call.1} parent=23 // pred_fallthru
              _
          $region24: #{tpu_custom_call.1} parent=19 // pred_fallthru
            _
          %266 = vnop
        $region20: #{tpu_custom_call.1} parent=15 // pred_fallthru
          _
        // Predicated region
        $region55: #{tpu_custom_call.1} parent=15 // pred_check
          %p267 = pneg %p70
        $region56: #{tpu_custom_call.1} parent=15 // pred_check_branch
          %269 = sbr.rel (%p267) target = $region58
        $region57: #{tpu_custom_call.1} parent=15 // pred_region
          %p270 = scmp.lt.s32.totalorder %s17, 0
          %s271 = scalar_select %p270, %s17, 0
          %p272 = scmp.lt.s32.totalorder %s18, 7
          %s273 = scalar_select %p272, %s18, 7
          %s274 = smul.addr %s271, 8
          %s275 = sadd.s32 %s273, %s274
          %s276 = scalar_lea.vmem %s1, %s275
        $region58: #{tpu_custom_call.1} parent=15 // pred_fallthru
          _
        // Predicated region
        $region59: #{tpu_custom_call.1} parent=15 // pred_check
          %p277 = pneg %p98
        $region60: #{tpu_custom_call.1} parent=15 // pred_check_branch
          %279 = sbr.rel (%p277) target = $region62
        $region61: #{tpu_custom_call.1} parent=15 // pred_region
          %s280 = smul.u32 16, %s18
          %s281 = ssub.s32 120, %s280
          %p282 = scmp.lt.s32.totalorder %s281, 16
          %s283 = scalar_select %p282, %s281, 16
          %s284 = smul.u32 128, %s283
          %s285 = smul.u32 %s284, 2
          %p286 = scmp.lt.s32.totalorder %s17, 0
          %s287 = scalar_select %p286, %s17, 0
          %p288 = scmp.lt.s32.totalorder %s280, 119
          %s289 = scalar_select %p288, %s280, 119
          %s290 = smul.addr %s289, 2
          %s291 = smul.addr %s287, 240
          %s292 = sadd.s32 %s290, %s291
          %s293 = smul.addr %s292, 8
          %s294 = scalar_lea.vmem %s2, %s293
          %s295 = smul.u32 16, %s18
          %s296 = ssub.s32 120, %s295
          %p297 = scmp.lt.s32.totalorder %s296, 16
          %s298 = scalar_select %p297, %s296, 16
          %s299 = smul.u32 128, %s298
          %s300 = smul.u32 %s299, 2
        $region62: #{tpu_custom_call.1} parent=15 // pred_fallthru
          _
      $region16: #{tpu_custom_call.1} parent=5 // pred_fallthru
        _
      %p301 = scmp.le.s32.totalorder 1, %s10
      %p302 = scmp.lt.s32.totalorder %s10, 9
      %p303 = pnand %p301, %p302
      %p304 = pneg %p303
      // Predicated region
      $region63: #{tpu_custom_call.1} parent=5 // pred_check
        _
      $region64: #{tpu_custom_call.1} parent=5 // pred_check_branch
        %306 = sbr.rel (%p303) target = $region66
      $region65: #{tpu_custom_call.1} parent=5 // pred_region
        %s307 = ssub.s32 %s10, 1
        %s308 = sand.u32 %s35, 1
        %s309 = sand.u32 %s35, 1
        %s310 = smul.addr %s309, 160
        %s311 = scalar_lea.vmem [#allocation3], %s310
        // Predicated region
        $region67: #{tpu_custom_call.1} parent=65 // pred_check
          %p312 = pneg %p48
        $region68: #{tpu_custom_call.1} parent=65 // pred_check_branch
          %314 = sbr.rel (%p312) target = $region70
        $region69: #{tpu_custom_call.1} parent=65 // pred_region
          _
        $region70: #{tpu_custom_call.1} parent=65 // pred_fallthru
          _
        %s315 = sand.u32 %s35, 1
        %s316 = sand.u32 %s35, 1
        %s317 = smul.addr %s316, 160
        %s318 = scalar_lea.vmem [#allocation3], %s317
        %p319 = pneg %p48
        %p320 = pneg %p45
        %p321 = scmp.lt.s32.totalorder %s19, 0
        %s322 = scalar_select %p321, %s19, 0
        %p323 = scmp.lt.s32.totalorder %s20, 7
        %s324 = scalar_select %p323, %s20, 7
        %s325 = smul.addr %s322, 8
        %s326 = sadd.s32 %s324, %s325
        %s327 = scalar_lea.vmem %s1, %s326
        %p328 = pneg %p76
        %p329 = pneg %p73
        %s330 = smul.u32 16, %s20
        %s331 = ssub.s32 120, %s330
        %p332 = scmp.lt.s32.totalorder %s331, 16
        %s333 = scalar_select %p332, %s331, 16
        %s334 = smul.u32 128, %s333
        %s335 = smul.u32 %s334, 2
        %p336 = scmp.lt.s32.totalorder %s19, 0
        %s337 = scalar_select %p336, %s19, 0
        %p338 = scmp.lt.s32.totalorder %s330, 119
        %s339 = scalar_select %p338, %s330, 119
        %s340 = smul.addr %s339, 2
        %s341 = smul.addr %s337, 240
        %s342 = sadd.s32 %s340, %s341
        %s343 = smul.addr %s342, 8
        %s344 = scalar_lea.vmem %s2, %s343
        %p345 = pneg %p104
        %p346 = pneg %p101
        %p347 = pneg %p130
        %p348 = pneg %p127
        %p349 = scmp.lt.s32.totalorder %s19, 0
        %s350 = scalar_select %p349, %s19, 0
        %p351 = scmp.lt.s32.totalorder %s20, 7
        %s352 = scalar_select %p351, %s20, 7
        %s353 = smul.addr %s350, 8
        %s354 = sadd.s32 %s352, %s353
        %s355 = scalar_lea.vmem %s1, %s354
        %s356 = smul.u32 16, %s20
        %s357 = ssub.s32 120, %s356
        %p358 = scmp.lt.s32.totalorder %s357, 16
        %s359 = scalar_select %p358, %s357, 16
        %s360 = smul.u32 128, %s359
        %s361 = smul.u32 %s360, 2
        %p362 = scmp.lt.s32.totalorder %s19, 0
        %s363 = scalar_select %p362, %s19, 0
        %p364 = scmp.lt.s32.totalorder %s356, 119
        %s365 = scalar_select %p364, %s356, 119
        %s366 = smul.addr %s365, 2
        %s367 = smul.addr %s363, 240
        %s368 = sadd.s32 %s366, %s367
        %s369 = smul.addr %s368, 8
        %s370 = scalar_lea.vmem %s2, %s369
        %s371 = smul.u32 16, %s20
        %s372 = ssub.s32 120, %s371
        %p373 = scmp.lt.s32.totalorder %s372, 16
        %s374 = scalar_select %p373, %s372, 16
        %s375 = smul.u32 128, %s374
        %s376 = smul.u32 %s375, 2
        %p378 = scmp.eq.s32.totalorder %s20, 0
        // Predicated region
        $region71: #{tpu_custom_call.1} parent=65 // pred_check
          %p379 = pneg %p378
        $region72: #{tpu_custom_call.1} parent=65 // pred_check_branch
          %381 = sbr.rel (%p379) target = $region74
        $region73: #{tpu_custom_call.1} parent=65 // pred_region
          %382 = vst [vmem:[#allocation2] sm:$0xff] 0.0
          %vm383 = vcmask 556032
          %384 = vst.msk [vmem:[#allocation2 + $0x8] sm:$0xff] %vm383, 0.0
          %385 = vst [vmem:[#allocation2 + $0x10] sm:$0xff] 0.0
          %386 = vst.msk [vmem:[#allocation2 + $0x18] sm:$0xff] %vm383, 0.0
          %387 = vst [vmem:[#allocation2 + $0x20] sm:$0xff] 0.0
          %388 = vst.msk [vmem:[#allocation2 + $0x28] sm:$0xff] %vm383, 0.0
          %389 = vst [vmem:[#allocation2 + $0x30] sm:$0xff] 0.0
          %390 = vst.msk [vmem:[#allocation2 + $0x38] sm:$0xff] %vm383, 0.0
          %391 = vst [vmem:[#allocation2 + $0x40] sm:$0xff] 0.0
          %392 = vst.msk [vmem:[#allocation2 + $0x48] sm:$0xff] %vm383, 0.0
          %393 = vst [vmem:[#allocation2 + $0x50] sm:$0xff] 0.0
          %394 = vst.msk [vmem:[#allocation2 + $0x58] sm:$0xff] %vm383, 0.0
          %395 = vst [vmem:[#allocation2 + $0x60] sm:$0xff] 0.0
          %396 = vst.msk [vmem:[#allocation2 + $0x68] sm:$0xff] %vm383, 0.0
          %397 = vst [vmem:[#allocation2 + $0x70] sm:$0xff] 0.0
          %398 = vst.msk [vmem:[#allocation2 + $0x78] sm:$0xff] %vm383, 0.0
          %399 = vst [vmem:[#allocation2 + $0x80] sm:$0xff] 0.0
          %400 = vst.msk [vmem:[#allocation2 + $0x88] sm:$0xff] %vm383, 0.0
          %401 = vst [vmem:[#allocation2 + $0x90] sm:$0xff] 0.0
          %402 = vst.msk [vmem:[#allocation2 + $0x98] sm:$0xff] %vm383, 0.0
          %403 = vst [vmem:[#allocation2 + $0xa0] sm:$0xff] 0.0
          %404 = vst.msk [vmem:[#allocation2 + $0xa8] sm:$0xff] %vm383, 0.0
          %405 = vst [vmem:[#allocation2 + $0xb0] sm:$0xff] 0.0
          %406 = vst.msk [vmem:[#allocation2 + $0xb8] sm:$0xff] %vm383, 0.0
          %407 = vst [vmem:[#allocation2 + $0xc0] sm:$0xff] 0.0
          %408 = vst.msk [vmem:[#allocation2 + $0xc8] sm:$0xff] %vm383, 0.0
          %409 = vst [vmem:[#allocation2 + $0xd0] sm:$0xff] 0.0
          %410 = vst.msk [vmem:[#allocation2 + $0xd8] sm:$0xff] %vm383, 0.0
          %411 = vst [vmem:[#allocation2 + $0xe0] sm:$0xff] 0.0
          %412 = vst.msk [vmem:[#allocation2 + $0xe8] sm:$0xff] %vm383, 0.0
          %413 = vst [vmem:[#allocation2 + $0xf0] sm:$0xff] 0.0
          %414 = vst.msk [vmem:[#allocation2 + $0xf8] sm:$0xff] %vm383, 0.0
          %415 = vst [vmem:[#allocation2 + $0x100] sm:$0xff] 0.0
          %416 = vst.msk [vmem:[#allocation2 + $0x108] sm:$0xff] %vm383, 0.0
          %417 = vst [vmem:[#allocation2 + $0x110] sm:$0xff] 0.0
          %418 = vst.msk [vmem:[#allocation2 + $0x118] sm:$0xff] %vm383, 0.0
          %419 = vst [vmem:[#allocation2 + $0x120] sm:$0xff] 0.0
          %420 = vst.msk [vmem:[#allocation2 + $0x128] sm:$0xff] %vm383, 0.0
          %421 = vst [vmem:[#allocation2 + $0x130] sm:$0xff] 0.0
          %422 = vst.msk [vmem:[#allocation2 + $0x138] sm:$0xff] %vm383, 0.0
        $region74: #{tpu_custom_call.1} parent=65 // pred_fallthru
          _
        %v423 = vld [vmem:[%s311] sm:$0xff]
        %v424 = vld [vmem:[%s311 + $0x8] sm:$0xff]
        %v425 = vld [vmem:[%s311 + $0x10] sm:$0xff]
        %v426 = vld [vmem:[%s311 + $0x18] sm:$0xff]
        %v427 = vld [vmem:[%s311 + $0x20] sm:$0xff]
        %v428 = vld [vmem:[%s311 + $0x28] sm:$0xff]
        %v429 = vld [vmem:[%s311 + $0x30] sm:$0xff]
        %v430 = vld [vmem:[%s311 + $0x38] sm:$0xff]
        %v431 = vld [vmem:[%s311 + $0x40] sm:$0xff]
        %v432 = vld [vmem:[%s311 + $0x48] sm:$0xff]
        %v433 = vld [vmem:[%s311 + $0x50] sm:$0xff]
        %v434 = vld [vmem:[%s311 + $0x58] sm:$0xff]
        %v435 = vld [vmem:[%s311 + $0x60] sm:$0xff]
        %v436 = vld [vmem:[%s311 + $0x68] sm:$0xff]
        %v437 = vld [vmem:[%s311 + $0x70] sm:$0xff]
        %v438 = vld [vmem:[%s311 + $0x78] sm:$0xff]
        %v439 = vld [vmem:[%s311 + $0x80] sm:$0xff]
        %v440 = vld [vmem:[%s311 + $0x88] sm:$0xff]
        %v441 = vld [vmem:[%s311 + $0x90] sm:$0xff]
        %v442 = vld [vmem:[%s311 + $0x98] sm:$0xff]
        %v443 = vld [vmem:[%s355] sm:$0x1]
        %v445 = vlaneseq
        %v446 = vshrl.u32 %v445, 7
        %v447 = vsub.s32 0, %v446
        %v448 = vrot.slane %v443, %v447
        %v450 = vmul.f32 %v423, %v448
        %v451 = vmul.f32 %v424, %v448
        %v452 = vmul.f32 %v425, %v448
        %v453 = vmul.f32 %v426, %v448
        %v454 = vmul.f32 %v427, %v448
        %v455 = vmul.f32 %v428, %v448
        %v456 = vmul.f32 %v429, %v448
        %v457 = vmul.f32 %v430, %v448
        %v458 = vmul.f32 %v431, %v448
        %v459 = vmul.f32 %v432, %v448
        %v460 = vmul.f32 %v433, %v448
        %v461 = vmul.f32 %v434, %v448
        %v462 = vmul.f32 %v435, %v448
        %v463 = vmul.f32 %v436, %v448
        %v464 = vmul.f32 %v437, %v448
        %v465 = vmul.f32 %v438, %v448
        %v466 = vmul.f32 %v439, %v448
        %v467 = vmul.f32 %v440, %v448
        %v468 = vmul.f32 %v441, %v448
        %v469 = vmul.f32 %v442, %v448
        %v470 = vld [vmem:[%s370] sm:$0xff]
        %v471 = vld [vmem:[%s370 + $0x8] sm:$0xff]
        %v472 = vld [vmem:[%s370 + $0x10] sm:$0xff]
        %v473 = vld [vmem:[%s370 + $0x18] sm:$0xff]
        %v474 = vld [vmem:[%s370 + $0x20] sm:$0xff]
        %v475 = vld [vmem:[%s370 + $0x28] sm:$0xff]
        %v476 = vld [vmem:[%s370 + $0x30] sm:$0xff]
        %v477 = vld [vmem:[%s370 + $0x38] sm:$0xff]
        %v478 = vld [vmem:[%s370 + $0x40] sm:$0xff]
        %v479 = vld [vmem:[%s370 + $0x48] sm:$0xff]
        %v480 = vld [vmem:[%s370 + $0x50] sm:$0xff]
        %v481 = vld [vmem:[%s370 + $0x58] sm:$0xff]
        %v482 = vld [vmem:[%s370 + $0x60] sm:$0xff]
        %v483 = vld [vmem:[%s370 + $0x68] sm:$0xff]
        %v484 = vld [vmem:[%s370 + $0x70] sm:$0xff]
        %v485 = vld [vmem:[%s370 + $0x78] sm:$0xff]
        %v486 = vld [vmem:[%s370 + $0x80] sm:$0xff]
        %v487 = vld [vmem:[%s370 + $0x88] sm:$0xff]
        %v488 = vld [vmem:[%s370 + $0x90] sm:$0xff]
        %v489 = vld [vmem:[%s370 + $0x98] sm:$0xff]
        %v490 = vld [vmem:[%s370 + $0xa0] sm:$0xff]
        %v491 = vld [vmem:[%s370 + $0xa8] sm:$0xff]
        %v492 = vld [vmem:[%s370 + $0xb0] sm:$0xff]
        %v493 = vld [vmem:[%s370 + $0xb8] sm:$0xff]
        %v494 = vld [vmem:[%s370 + $0xc0] sm:$0xff]
        %v495 = vld [vmem:[%s370 + $0xc8] sm:$0xff]
        %v496 = vld [vmem:[%s370 + $0xd0] sm:$0xff]
        %v497 = vld [vmem:[%s370 + $0xd8] sm:$0xff]
        %v498 = vld [vmem:[%s370 + $0xe0] sm:$0xff]
        %v499 = vld [vmem:[%s370 + $0xe8] sm:$0xff]
        %v500 = vld [vmem:[%s370 + $0xf0] sm:$0xff]
        %v501 = vld [vmem:[%s370 + $0xf8] sm:$0xff]
        %p502 = scmp.eq.s32.totalorder %s20, 7
        %s503 = scalar_select %p502, 64, 128
        %v504 = vlaneseq
        %v505 = vand.u32 %v504, 127
        %v506 = vstv %s503
        %vm507 = vcmp.lt.s32.totalorder %v505, %v506
        %v508 = vsel %vm507, %v450, 0.0
        %v509 = vsel %vm507, %v451, 0.0
        %v510 = vsel %vm507, %v452, 0.0
        %v511 = vsel %vm507, %v453, 0.0
        %v512 = vsel %vm507, %v454, 0.0
        %v513 = vsel %vm507, %v455, 0.0
        %v514 = vsel %vm507, %v456, 0.0
        %v515 = vsel %vm507, %v457, 0.0
        %v516 = vsel %vm507, %v458, 0.0
        %v517 = vsel %vm507, %v459, 0.0
        %v518 = vsel %vm507, %v460, 0.0
        %v519 = vsel %vm507, %v461, 0.0
        %v520 = vsel %vm507, %v462, 0.0
        %v521 = vsel %vm507, %v463, 0.0
        %v522 = vsel %vm507, %v464, 0.0
        %v523 = vsel %vm507, %v465, 0.0
        %v524 = vsel %vm507, %v466, 0.0
        %v525 = vsel %vm507, %v467, 0.0
        %v526 = vsel %vm507, %v468, 0.0
        %v527 = vsel %vm507, %v469, 0.0
        %v528 = vlaneseq
        %v529 = vshrl.u32 %v528, 7
        %v530 = vadd.s32 %v529, 8
        %v531 = vadd.s32 %v529, 16
        %v532 = vadd.s32 %v529, 24
        %v533 = vadd.s32 %v529, 32
        %v534 = vadd.s32 %v529, 40
        %v535 = vadd.s32 %v529, 48
        %v536 = vadd.s32 %v529, 56
        %v537 = vadd.s32 %v529, 64
        %v538 = vadd.s32 %v529, 72
        %v539 = vadd.s32 %v529, 80
        %v540 = vadd.s32 %v529, 88
        %v541 = vadd.s32 %v529, 96
        %v542 = vadd.s32 %v529, 104
        %v543 = vadd.s32 %v529, 112
        %v544 = vadd.s32 %v529, 120
        %vm545 = vcmp.lt.s32.totalorder %v529, %v506
        %vm546 = vcmp.lt.s32.totalorder %v530, %v506
        %vm547 = vcmp.lt.s32.totalorder %v531, %v506
        %vm548 = vcmp.lt.s32.totalorder %v532, %v506
        %vm549 = vcmp.lt.s32.totalorder %v533, %v506
        %vm550 = vcmp.lt.s32.totalorder %v534, %v506
        %vm551 = vcmp.lt.s32.totalorder %v535, %v506
        %vm552 = vcmp.lt.s32.totalorder %v536, %v506
        %vm553 = vcmp.lt.s32.totalorder %v537, %v506
        %vm554 = vcmp.lt.s32.totalorder %v538, %v506
        %vm555 = vcmp.lt.s32.totalorder %v539, %v506
        %vm556 = vcmp.lt.s32.totalorder %v540, %v506
        %vm557 = vcmp.lt.s32.totalorder %v541, %v506
        %vm558 = vcmp.lt.s32.totalorder %v542, %v506
        %vm559 = vcmp.lt.s32.totalorder %v543, %v506
        %vm560 = vcmp.lt.s32.totalorder %v544, %v506
        %v561 = vsel %vm545, %v470, 0.0
        %v562 = vsel %vm545, %v471, 0.0
        %v563 = vsel %vm546, %v472, 0.0
        %v564 = vsel %vm546, %v473, 0.0
        %v565 = vsel %vm547, %v474, 0.0
        %v566 = vsel %vm547, %v475, 0.0
        %v567 = vsel %vm548, %v476, 0.0
        %v568 = vsel %vm548, %v477, 0.0
        %v569 = vsel %vm549, %v478, 0.0
        %v570 = vsel %vm549, %v479, 0.0
        %v571 = vsel %vm550, %v480, 0.0
        %v572 = vsel %vm550, %v481, 0.0
        %v573 = vsel %vm551, %v482, 0.0
        %v574 = vsel %vm551, %v483, 0.0
        %v575 = vsel %vm552, %v484, 0.0
        %v576 = vsel %vm552, %v485, 0.0
        %v577 = vsel %vm553, %v486, 0.0
        %v578 = vsel %vm553, %v487, 0.0
        %v579 = vsel %vm554, %v488, 0.0
        %v580 = vsel %vm554, %v489, 0.0
        %v581 = vsel %vm555, %v490, 0.0
        %v582 = vsel %vm555, %v491, 0.0
        %v583 = vsel %vm556, %v492, 0.0
        %v584 = vsel %vm556, %v493, 0.0
        %v585 = vsel %vm557, %v494, 0.0
        %v586 = vsel %vm557, %v495, 0.0
        %v587 = vsel %vm558, %v496, 0.0
        %v588 = vsel %vm558, %v497, 0.0
        %v589 = vsel %vm559, %v498, 0.0
        %v590 = vsel %vm559, %v499, 0.0
        %v591 = vsel %vm560, %v500, 0.0
        %v592 = vsel %vm560, %v501, 0.0
        %v593 = vld [vmem:[#allocation2] sm:$0xff]
        %v594 = vld [vmem:[#allocation2 + $0x8] sm:$0xff]
        %v595 = vld [vmem:[#allocation2 + $0x10] sm:$0xff]
        %v596 = vld [vmem:[#allocation2 + $0x18] sm:$0xff]
        %v597 = vld [vmem:[#allocation2 + $0x20] sm:$0xff]
        %v598 = vld [vmem:[#allocation2 + $0x28] sm:$0xff]
        %v599 = vld [vmem:[#allocation2 + $0x30] sm:$0xff]
        %v600 = vld [vmem:[#allocation2 + $0x38] sm:$0xff]
        %v601 = vld [vmem:[#allocation2 + $0x40] sm:$0xff]
        %v602 = vld [vmem:[#allocation2 + $0x48] sm:$0xff]
        %v603 = vld [vmem:[#allocation2 + $0x50] sm:$0xff]
        %v604 = vld [vmem:[#allocation2 + $0x58] sm:$0xff]
        %v605 = vld [vmem:[#allocation2 + $0x60] sm:$0xff]
        %v606 = vld [vmem:[#allocation2 + $0x68] sm:$0xff]
        %v607 = vld [vmem:[#allocation2 + $0x70] sm:$0xff]
        %v608 = vld [vmem:[#allocation2 + $0x78] sm:$0xff]
        %v609 = vld [vmem:[#allocation2 + $0x80] sm:$0xff]
        %v610 = vld [vmem:[#allocation2 + $0x88] sm:$0xff]
        %v611 = vld [vmem:[#allocation2 + $0x90] sm:$0xff]
        %v612 = vld [vmem:[#allocation2 + $0x98] sm:$0xff]
        %v613 = vld [vmem:[#allocation2 + $0xa0] sm:$0xff]
        %v614 = vld [vmem:[#allocation2 + $0xa8] sm:$0xff]
        %v615 = vld [vmem:[#allocation2 + $0xb0] sm:$0xff]
        %v616 = vld [vmem:[#allocation2 + $0xb8] sm:$0xff]
        %v617 = vld [vmem:[#allocation2 + $0xc0] sm:$0xff]
        %v618 = vld [vmem:[#allocation2 + $0xc8] sm:$0xff]
        %v619 = vld [vmem:[#allocation2 + $0xd0] sm:$0xff]
        %v620 = vld [vmem:[#allocation2 + $0xd8] sm:$0xff]
        %v621 = vld [vmem:[#allocation2 + $0xe0] sm:$0xff]
        %v622 = vld [vmem:[#allocation2 + $0xe8] sm:$0xff]
        %v623 = vld [vmem:[#allocation2 + $0xf0] sm:$0xff]
        %v624 = vld [vmem:[#allocation2 + $0xf8] sm:$0xff]
        %v625 = vld [vmem:[#allocation2 + $0x100] sm:$0xff]
        %v626 = vld [vmem:[#allocation2 + $0x108] sm:$0xff]
        %v627 = vld [vmem:[#allocation2 + $0x110] sm:$0xff]
        %v628 = vld [vmem:[#allocation2 + $0x118] sm:$0xff]
        %v629 = vld [vmem:[#allocation2 + $0x120] sm:$0xff]
        %v630 = vld [vmem:[#allocation2 + $0x128] sm:$0xff]
        %v631 = vld [vmem:[#allocation2 + $0x130] sm:$0xff]
        %v632 = vld [vmem:[#allocation2 + $0x138] sm:$0xff]
        %v633 = vpack.c.bf16 %v509, %v508
        %v634 = vpack.c.bf16 %v511, %v510
        %v635 = vpack.c.bf16 %v513, %v512
        %v636 = vpack.c.bf16 %v515, %v514
        %v637 = vpack.c.bf16 %v517, %v516
        %v638 = vpack.c.bf16 %v519, %v518
        %v639 = vpack.c.bf16 %v521, %v520
        %v640 = vpack.c.bf16 %v523, %v522
        %v641 = vpack.c.bf16 %v525, %v524
        %v642 = vpack.c.bf16 %v527, %v526
        %v643 = vpack.c.bf16 %v563, %v561
        %v644 = vpack.c.bf16 %v564, %v562
        %v645 = vpack.c.bf16 %v567, %v565
        %v646 = vpack.c.bf16 %v568, %v566
        %v647 = vpack.c.bf16 %v571, %v569
        %v648 = vpack.c.bf16 %v572, %v570
        %v649 = vpack.c.bf16 %v575, %v573
        %v650 = vpack.c.bf16 %v576, %v574
        %v651 = vpack.c.bf16 %v579, %v577
        %v652 = vpack.c.bf16 %v580, %v578
        %v653 = vpack.c.bf16 %v583, %v581
        %v654 = vpack.c.bf16 %v584, %v582
        %v655 = vpack.c.bf16 %v587, %v585
        %v656 = vpack.c.bf16 %v588, %v586
        %v657 = vpack.c.bf16 %v591, %v589
        %v658 = vpack.c.bf16 %v592, %v590
        %659 = vmatprep.subr.bf16.mxu0 %v658
        %660 = vmatpush1.bf16.msra.mxu0 %v657
        %661 = vmatprep.subr.bf16.mxu0 %v656
        %662 = vmatpush1.bf16.msra.mxu0 %v655
        %663 = vmatprep.subr.bf16.mxu0 %v654
        %664 = vmatpush1.bf16.msra.mxu0 %v653
        %665 = vmatprep.subr.bf16.mxu0 %v652
        %666 = vmatpush1.bf16.msra.mxu0 %v651
        %667 = vmatprep.subr.bf16.mxu0 %v650
        %668 = vmatpush1.bf16.msra.mxu0 %v649
        %669 = vmatprep.subr.bf16.mxu0 %v648
        %670 = vmatpush1.bf16.msra.mxu0 %v647
        %671 = vmatprep.subr.bf16.mxu0 %v646
        %672 = vmatpush1.bf16.msra.mxu0 %v645
        %673 = vmatprep.subr.bf16.mxu0 %v644
        %674 = vmatpush1.bf16.msra.mxu0 %v643
        %675 = vmatprep.subr.bf16.mxu0 0
        %676 = vmatpush2.bf16.msra.mxu0 0
        %677 = vmatprep.subr.bf16.mxu0 0
        %678 = vmatpush2.bf16.msra.mxu0 0
        %679 = vmatprep.subr.bf16.mxu0 0
        %680 = vmatpush2.bf16.msra.mxu0 0
        %681 = vmatprep.subr.bf16.mxu0 0
        %682 = vmatpush2.bf16.msra.mxu0 0
        %683 = vmatprep.subr.bf16.mxu0 0
        %684 = vmatpush2.bf16.msra.mxu0 0
        %685 = vmatprep.subr.bf16.mxu0 0
        %686 = vmatpush2.bf16.msra.mxu0 0
        %687 = vmatprep.subr.bf16.mxu0 0
        %688 = vmatpush2.bf16.msra.mxu0 0
        %689 = vmatprep.subr.bf16.mxu0 0
        %690 = vmatpush2.bf16.msra.mxu0 0
        %691 = vmatprep.mubr.bf16.mxu0 0
        %692 = vmatmul.mubr.bf16.gmra.mxu0 %v633
        %v693 = vpop.f32.mrf.mxu0
        %v694 = vadd.f32 0.0, %v693
        %v695 = vpop.f32.mrf.mxu0
        %v696 = vadd.f32 0.0, %v695
        %v697 = vpop.f32.mrf.mxu0
        %v698 = vadd.f32 0.0, %v697
        %v699 = vpop.f32.mrf.mxu0
        %v700 = vadd.f32 0.0, %v699
        %701 = vmatprep.mubr.bf16.mxu0 0
        %702 = vmatmul.mubr.bf16.gmra.mxu0 %v634
        %v703 = vpop.f32.mrf.mxu0
        %v704 = vadd.f32 0.0, %v703
        %v705 = vpop.f32.mrf.mxu0
        %v706 = vadd.f32 0.0, %v705
        %v707 = vpop.f32.mrf.mxu0
        %v708 = vadd.f32 0.0, %v707
        %v709 = vpop.f32.mrf.mxu0
        %v710 = vadd.f32 0.0, %v709
        %711 = vmatprep.mubr.bf16.mxu0 0
        %712 = vmatmul.mubr.bf16.gmra.mxu0 %v635
        %v713 = vpop.f32.mrf.mxu0
        %v714 = vadd.f32 0.0, %v713
        %v715 = vpop.f32.mrf.mxu0
        %v716 = vadd.f32 0.0, %v715
        %v717 = vpop.f32.mrf.mxu0
        %v718 = vadd.f32 0.0, %v717
        %v719 = vpop.f32.mrf.mxu0
        %v720 = vadd.f32 0.0, %v719
        %721 = vmatprep.mubr.bf16.mxu0 0
        %722 = vmatmul.mubr.bf16.gmra.mxu0 %v636
        %v723 = vpop.f32.mrf.mxu0
        %v724 = vadd.f32 0.0, %v723
        %v725 = vpop.f32.mrf.mxu0
        %v726 = vadd.f32 0.0, %v725
        %v727 = vpop.f32.mrf.mxu0
        %v728 = vadd.f32 0.0, %v727
        %v729 = vpop.f32.mrf.mxu0
        %v730 = vadd.f32 0.0, %v729
        %731 = vmatprep.mubr.bf16.mxu0 0
        %732 = vmatmul.mubr.bf16.gmra.mxu0 %v637
        %v733 = vpop.f32.mrf.mxu0
        %v734 = vadd.f32 0.0, %v733
        %v735 = vpop.f32.mrf.mxu0
        %v736 = vadd.f32 0.0, %v735
        %v737 = vpop.f32.mrf.mxu0
        %v738 = vadd.f32 0.0, %v737
        %v739 = vpop.f32.mrf.mxu0
        %v740 = vadd.f32 0.0, %v739
        %741 = vmatprep.mubr.bf16.mxu0 0
        %742 = vmatmul.mubr.bf16.gmra.mxu0 %v638
        %v743 = vpop.f32.mrf.mxu0
        %v744 = vadd.f32 0.0, %v743
        %v745 = vpop.f32.mrf.mxu0
        %v746 = vadd.f32 0.0, %v745
        %v747 = vpop.f32.mrf.mxu0
        %v748 = vadd.f32 0.0, %v747
        %v749 = vpop.f32.mrf.mxu0
        %v750 = vadd.f32 0.0, %v749
        %751 = vmatprep.mubr.bf16.mxu0 0
        %752 = vmatmul.mubr.bf16.gmra.mxu0 %v639
        %v753 = vpop.f32.mrf.mxu0
        %v754 = vadd.f32 0.0, %v753
        %v755 = vpop.f32.mrf.mxu0
        %v756 = vadd.f32 0.0, %v755
        %v757 = vpop.f32.mrf.mxu0
        %v758 = vadd.f32 0.0, %v757
        %v759 = vpop.f32.mrf.mxu0
        %v760 = vadd.f32 0.0, %v759
        %761 = vmatprep.mubr.bf16.mxu0 0
        %762 = vmatmul.mubr.bf16.gmra.mxu0 %v640
        %v763 = vpop.f32.mrf.mxu0
        %v764 = vadd.f32 0.0, %v763
        %v765 = vpop.f32.mrf.mxu0
        %v766 = vadd.f32 0.0, %v765
        %v767 = vpop.f32.mrf.mxu0
        %v768 = vadd.f32 0.0, %v767
        %v769 = vpop.f32.mrf.mxu0
        %v770 = vadd.f32 0.0, %v769
        %771 = vmatprep.mubr.bf16.mxu0 0
        %772 = vmatmul.mubr.bf16.gmra.mxu0 %v641
        %v773 = vpop.f32.mrf.mxu0
        %v774 = vadd.f32 0.0, %v773
        %v775 = vpop.f32.mrf.mxu0
        %v776 = vadd.f32 0.0, %v775
        %v777 = vpop.f32.mrf.mxu0
        %v778 = vadd.f32 0.0, %v777
        %v779 = vpop.f32.mrf.mxu0
        %v780 = vadd.f32 0.0, %v779
        %781 = vmatprep.mubr.bf16.mxu0 0
        %782 = vmatmul.mubr.bf16.gmra.mxu0 %v642
        %v783 = vpop.f32.mrf.mxu0
        %v784 = vadd.f32 0.0, %v783
        %v785 = vpop.f32.mrf.mxu0
        %v786 = vadd.f32 0.0, %v785
        %v787 = vpop.f32.mrf.mxu0
        %v788 = vadd.f32 0.0, %v787
        %v789 = vpop.f32.mrf.mxu0
        %v790 = vadd.f32 0.0, %v789
        %791 = vdwg.mxu0
        %v792 = vadd.f32 %v593, %v694
        %v793 = vadd.f32 %v594, %v696
        %v794 = vadd.f32 %v595, %v698
        %v795 = vadd.f32 %v596, %v700
        %v796 = vadd.f32 %v597, %v704
        %v797 = vadd.f32 %v598, %v706
        %v798 = vadd.f32 %v599, %v708
        %v799 = vadd.f32 %v600, %v710
        %v800 = vadd.f32 %v601, %v714
        %v801 = vadd.f32 %v602, %v716
        %v802 = vadd.f32 %v603, %v718
        %v803 = vadd.f32 %v604, %v720
        %v804 = vadd.f32 %v605, %v724
        %v805 = vadd.f32 %v606, %v726
        %v806 = vadd.f32 %v607, %v728
        %v807 = vadd.f32 %v608, %v730
        %v808 = vadd.f32 %v609, %v734
        %v809 = vadd.f32 %v610, %v736
        %v810 = vadd.f32 %v611, %v738
        %v811 = vadd.f32 %v612, %v740
        %v812 = vadd.f32 %v613, %v744
        %v813 = vadd.f32 %v614, %v746
        %v814 = vadd.f32 %v615, %v748
        %v815 = vadd.f32 %v616, %v750
        %v816 = vadd.f32 %v617, %v754
        %v817 = vadd.f32 %v618, %v756
        %v818 = vadd.f32 %v619, %v758
        %v819 = vadd.f32 %v620, %v760
        %v820 = vadd.f32 %v621, %v764
        %v821 = vadd.f32 %v622, %v766
        %v822 = vadd.f32 %v623, %v768
        %v823 = vadd.f32 %v624, %v770
        %v824 = vadd.f32 %v625, %v774
        %v825 = vadd.f32 %v626, %v776
        %v826 = vadd.f32 %v627, %v778
        %v827 = vadd.f32 %v628, %v780
        %v828 = vadd.f32 %v629, %v784
        %v829 = vadd.f32 %v630, %v786
        %v830 = vadd.f32 %v631, %v788
        %v831 = vadd.f32 %v632, %v790
        %832 = vst [vmem:[#allocation2] sm:$0xff] %v792
        %vm833 = vcmask 556032
        %834 = vst.msk [vmem:[#allocation2 + $0x8] sm:$0xff] %vm833, %v793
        %835 = vst [vmem:[#allocation2 + $0x10] sm:$0xff] %v794
        %836 = vst.msk [vmem:[#allocation2 + $0x18] sm:$0xff] %vm833, %v795
        %837 = vst [vmem:[#allocation2 + $0x20] sm:$0xff] %v796
        %838 = vst.msk [vmem:[#allocation2 + $0x28] sm:$0xff] %vm833, %v797
        %839 = vst [vmem:[#allocation2 + $0x30] sm:$0xff] %v798
        %840 = vst.msk [vmem:[#allocation2 + $0x38] sm:$0xff] %vm833, %v799
        %841 = vst [vmem:[#allocation2 + $0x40] sm:$0xff] %v800
        %842 = vst.msk [vmem:[#allocation2 + $0x48] sm:$0xff] %vm833, %v801
        %843 = vst [vmem:[#allocation2 + $0x50] sm:$0xff] %v802
        %844 = vst.msk [vmem:[#allocation2 + $0x58] sm:$0xff] %vm833, %v803
        %845 = vst [vmem:[#allocation2 + $0x60] sm:$0xff] %v804
        %846 = vst.msk [vmem:[#allocation2 + $0x68] sm:$0xff] %vm833, %v805
        %847 = vst [vmem:[#allocation2 + $0x70] sm:$0xff] %v806
        %848 = vst.msk [vmem:[#allocation2 + $0x78] sm:$0xff] %vm833, %v807
        %849 = vst [vmem:[#allocation2 + $0x80] sm:$0xff] %v808
        %850 = vst.msk [vmem:[#allocation2 + $0x88] sm:$0xff] %vm833, %v809
        %851 = vst [vmem:[#allocation2 + $0x90] sm:$0xff] %v810
        %852 = vst.msk [vmem:[#allocation2 + $0x98] sm:$0xff] %vm833, %v811
        %853 = vst [vmem:[#allocation2 + $0xa0] sm:$0xff] %v812
        %854 = vst.msk [vmem:[#allocation2 + $0xa8] sm:$0xff] %vm833, %v813
        %855 = vst [vmem:[#allocation2 + $0xb0] sm:$0xff] %v814
        %856 = vst.msk [vmem:[#allocation2 + $0xb8] sm:$0xff] %vm833, %v815
        %857 = vst [vmem:[#allocation2 + $0xc0] sm:$0xff] %v816
        %858 = vst.msk [vmem:[#allocation2 + $0xc8] sm:$0xff] %vm833, %v817
        %859 = vst [vmem:[#allocation2 + $0xd0] sm:$0xff] %v818
        %860 = vst.msk [vmem:[#allocation2 + $0xd8] sm:$0xff] %vm833, %v819
        %861 = vst [vmem:[#allocation2 + $0xe0] sm:$0xff] %v820
        %862 = vst.msk [vmem:[#allocation2 + $0xe8] sm:$0xff] %vm833, %v821
        %863 = vst [vmem:[#allocation2 + $0xf0] sm:$0xff] %v822
        %864 = vst.msk [vmem:[#allocation2 + $0xf8] sm:$0xff] %vm833, %v823
        %865 = vst [vmem:[#allocation2 + $0x100] sm:$0xff] %v824
        %866 = vst.msk [vmem:[#allocation2 + $0x108] sm:$0xff] %vm833, %v825
        %867 = vst [vmem:[#allocation2 + $0x110] sm:$0xff] %v826
        %868 = vst.msk [vmem:[#allocation2 + $0x118] sm:$0xff] %vm833, %v827
        %869 = vst [vmem:[#allocation2 + $0x120] sm:$0xff] %v828
        %870 = vst.msk [vmem:[#allocation2 + $0x128] sm:$0xff] %vm833, %v829
        %871 = vst [vmem:[#allocation2 + $0x130] sm:$0xff] %v830
        %872 = vst.msk [vmem:[#allocation2 + $0x138] sm:$0xff] %vm833, %v831
        // Predicated region
        $region75: #{tpu_custom_call.1} parent=65 // pred_check
          %p873 = pneg %p502
        $region76: #{tpu_custom_call.1} parent=65 // pred_check_branch
          %875 = sbr.rel (%p873) target = $region78
        $region77: #{tpu_custom_call.1} parent=65 // pred_region
          %v876 = vld [vmem:[#allocation2] sm:$0xff]
          %v877 = vld [vmem:[#allocation2 + $0x8] sm:$0xff]
          %v878 = vld [vmem:[#allocation2 + $0x10] sm:$0xff]
          %v879 = vld [vmem:[#allocation2 + $0x18] sm:$0xff]
          %v880 = vld [vmem:[#allocation2 + $0x20] sm:$0xff]
          %v881 = vld [vmem:[#allocation2 + $0x28] sm:$0xff]
          %v882 = vld [vmem:[#allocation2 + $0x30] sm:$0xff]
          %v883 = vld [vmem:[#allocation2 + $0x38] sm:$0xff]
          %v884 = vld [vmem:[#allocation2 + $0x40] sm:$0xff]
          %v885 = vld [vmem:[#allocation2 + $0x48] sm:$0xff]
          %v886 = vld [vmem:[#allocation2 + $0x50] sm:$0xff]
          %v887 = vld [vmem:[#allocation2 + $0x58] sm:$0xff]
          %v888 = vld [vmem:[#allocation2 + $0x60] sm:$0xff]
          %v889 = vld [vmem:[#allocation2 + $0x68] sm:$0xff]
          %v890 = vld [vmem:[#allocation2 + $0x70] sm:$0xff]
          %v891 = vld [vmem:[#allocation2 + $0x78] sm:$0xff]
          %v892 = vld [vmem:[#allocation2 + $0x80] sm:$0xff]
          %v893 = vld [vmem:[#allocation2 + $0x88] sm:$0xff]
          %v894 = vld [vmem:[#allocation2 + $0x90] sm:$0xff]
          %v895 = vld [vmem:[#allocation2 + $0x98] sm:$0xff]
          %v896 = vld [vmem:[#allocation2 + $0xa0] sm:$0xff]
          %v897 = vld [vmem:[#allocation2 + $0xa8] sm:$0xff]
          %v898 = vld [vmem:[#allocation2 + $0xb0] sm:$0xff]
          %v899 = vld [vmem:[#allocation2 + $0xb8] sm:$0xff]
          %v900 = vld [vmem:[#allocation2 + $0xc0] sm:$0xff]
          %v901 = vld [vmem:[#allocation2 + $0xc8] sm:$0xff]
          %v902 = vld [vmem:[#allocation2 + $0xd0] sm:$0xff]
          %v903 = vld [vmem:[#allocation2 + $0xd8] sm:$0xff]
          %v904 = vld [vmem:[#allocation2 + $0xe0] sm:$0xff]
          %v905 = vld [vmem:[#allocation2 + $0xe8] sm:$0xff]
          %v906 = vld [vmem:[#allocation2 + $0xf0] sm:$0xff]
          %v907 = vld [vmem:[#allocation2 + $0xf8] sm:$0xff]
          %v908 = vld [vmem:[#allocation2 + $0x100] sm:$0xff]
          %v909 = vld [vmem:[#allocation2 + $0x108] sm:$0xff]
          %v910 = vld [vmem:[#allocation2 + $0x110] sm:$0xff]
          %v911 = vld [vmem:[#allocation2 + $0x118] sm:$0xff]
          %v912 = vld [vmem:[#allocation2 + $0x120] sm:$0xff]
          %v913 = vld [vmem:[#allocation2 + $0x128] sm:$0xff]
          %v914 = vld [vmem:[#allocation2 + $0x130] sm:$0xff]
          %v915 = vld [vmem:[#allocation2 + $0x138] sm:$0xff]
          %916 = vst [vmem:[#allocation4] sm:$0xff] %v876
          %917 = vst.msk [vmem:[#allocation4 + $0x8] sm:$0xff] %vm833, %v877
          %918 = vst [vmem:[#allocation4 + $0x10] sm:$0xff] %v878
          %919 = vst.msk [vmem:[#allocation4 + $0x18] sm:$0xff] %vm833, %v879
          %920 = vst [vmem:[#allocation4 + $0x20] sm:$0xff] %v880
          %921 = vst.msk [vmem:[#allocation4 + $0x28] sm:$0xff] %vm833, %v881
          %922 = vst [vmem:[#allocation4 + $0x30] sm:$0xff] %v882
          %923 = vst.msk [vmem:[#allocation4 + $0x38] sm:$0xff] %vm833, %v883
          %924 = vst [vmem:[#allocation4 + $0x40] sm:$0xff] %v884
          %925 = vst.msk [vmem:[#allocation4 + $0x48] sm:$0xff] %vm833, %v885
          %926 = vst [vmem:[#allocation4 + $0x50] sm:$0xff] %v886
          %927 = vst.msk [vmem:[#allocation4 + $0x58] sm:$0xff] %vm833, %v887
          %928 = vst [vmem:[#allocation4 + $0x60] sm:$0xff] %v888
          %929 = vst.msk [vmem:[#allocation4 + $0x68] sm:$0xff] %vm833, %v889
          %930 = vst [vmem:[#allocation4 + $0x70] sm:$0xff] %v890
          %931 = vst.msk [vmem:[#allocation4 + $0x78] sm:$0xff] %vm833, %v891
          %932 = vst [vmem:[#allocation4 + $0x80] sm:$0xff] %v892
          %933 = vst.msk [vmem:[#allocation4 + $0x88] sm:$0xff] %vm833, %v893
          %934 = vst [vmem:[#allocation4 + $0x90] sm:$0xff] %v894
          %935 = vst.msk [vmem:[#allocation4 + $0x98] sm:$0xff] %vm833, %v895
          %936 = vst [vmem:[#allocation4 + $0xa0] sm:$0xff] %v896
          %937 = vst.msk [vmem:[#allocation4 + $0xa8] sm:$0xff] %vm833, %v897
          %938 = vst [vmem:[#allocation4 + $0xb0] sm:$0xff] %v898
          %939 = vst.msk [vmem:[#allocation4 + $0xb8] sm:$0xff] %vm833, %v899
          %940 = vst [vmem:[#allocation4 + $0xc0] sm:$0xff] %v900
          %941 = vst.msk [vmem:[#allocation4 + $0xc8] sm:$0xff] %vm833, %v901
          %942 = vst [vmem:[#allocation4 + $0xd0] sm:$0xff] %v902
          %943 = vst.msk [vmem:[#allocation4 + $0xd8] sm:$0xff] %vm833, %v903
          %944 = vst [vmem:[#allocation4 + $0xe0] sm:$0xff] %v904
          %945 = vst.msk [vmem:[#allocation4 + $0xe8] sm:$0xff] %vm833, %v905
          %946 = vst [vmem:[#allocation4 + $0xf0] sm:$0xff] %v906
          %947 = vst.msk [vmem:[#allocation4 + $0xf8] sm:$0xff] %vm833, %v907
          %948 = vst [vmem:[#allocation4 + $0x100] sm:$0xff] %v908
          %949 = vst.msk [vmem:[#allocation4 + $0x108] sm:$0xff] %vm833, %v909
          %950 = vst [vmem:[#allocation4 + $0x110] sm:$0xff] %v910
          %951 = vst.msk [vmem:[#allocation4 + $0x118] sm:$0xff] %vm833, %v911
          %952 = vst [vmem:[#allocation4 + $0x120] sm:$0xff] %v912
          %953 = vst.msk [vmem:[#allocation4 + $0x128] sm:$0xff] %vm833, %v913
          %954 = vst [vmem:[#allocation4 + $0x130] sm:$0xff] %v914
          %955 = vst.msk [vmem:[#allocation4 + $0x138] sm:$0xff] %vm833, %v915
        $region78: #{tpu_custom_call.1} parent=65 // pred_fallthru
          _
        // Predicated region
        $region79: #{tpu_custom_call.1} parent=65 // pred_check
          %p956 = pneg %p127
        $region80: #{tpu_custom_call.1} parent=65 // pred_check_branch
          %958 = sbr.rel (%p956) target = $region82
        $region81: #{tpu_custom_call.1} parent=65 // pred_region
          %s960 = ssub.s32 5120, 5120
          %961 = vsyncadd [#allocation5], %s960
          %s962 = smul.addr %s19, 40
          %s963 = smul.addr %s962, 128
          %s964 = scalar_lea.hbm %s3, %s963
          %s965 = sshll.u32 [#allocation4], 4
          %s966 = int_to_ptr.vmem [resolvable:$true] %s965
          %971 = dma.vmem_to_hbm [thread:$0]  %s966, 5120, %s964, [#allocation5], 256, 256, 16
        $region82: #{tpu_custom_call.1} parent=65 // pred_fallthru
          _
        // Predicated region
        $region83: #{tpu_custom_call.1} parent=65 // pred_check
          %p972 = pneg %p127
        $region84: #{tpu_custom_call.1} parent=65 // pred_check_branch
          %974 = sbr.rel (%p972) target = $region86
        $region85: #{tpu_custom_call.1} parent=65 // pred_region
          %975 = dma.done [#allocation5], 5120
        $region86: #{tpu_custom_call.1} parent=65 // pred_fallthru
          _
      $region66: #{tpu_custom_call.1} parent=5 // pred_fallthru
        _
      %p976 = scmp.le.s32.totalorder 2, %s10
      // Predicated region
      $region87: #{tpu_custom_call.1} parent=5 // pred_check
        %p977 = pneg %p976
      $region88: #{tpu_custom_call.1} parent=5 // pred_check_branch
        %979 = sbr.rel (%p977) target = $region90
      $region89: #{tpu_custom_call.1} parent=5 // pred_region
        %s980 = ssub.s32 %s10, 2
      $region90: #{tpu_custom_call.1} parent=5 // pred_fallthru
        _
    $region6: #{tpu_custom_call.1} parent=1 // loop_footer
      %s14 = sadd.s32 1, %s10
    $region7: #{tpu_custom_call.1} parent=1 // loop_footer_branch
      %9 = sbr.rel target = $region3
    $region8: #{tpu_custom_call.1} parent=1 // loop_exit
      _
    %981 = vsyncpa [#allocation5], 1
    %s982 = scalar_lea.sflag [#allocation5], 1
    %983 = vsyncpa %s982, 1

</llo_original>
